<compile_context>
chip_gen: v7x
topology: tpu7x:2x2x1
jax: 0.10.0
libtpu: 0.0.40
codegen_flags: <defaults>
</compile_context>

<pallas_src>
import jax
import jax.numpy as jnp
from jax.experimental import pallas as pl
from jax.experimental.pallas import tpu as pltpu

EPS = 1e-8
_MAX_GROUPS_PER_BLOCK = 512   # <= 2 MiB per input per pipeline buffer


def _cosine_kernel(cav_sq_ref, x_ref, c_ref, out_ref, dot_acc, xx_acc):
    """Grid axis 0 is a reduction over feature chunks (accumulator pattern)."""
    k = pl.program_id(0)

    @pl.when(k == 0)
    def _():
        dot_acc[...] = jnp.zeros_like(dot_acc)
        xx_acc[...] = jnp.zeros_like(xx_acc)

    gpb, sub, _ = x_ref.shape

    # Explicit per-group accumulation into single-vreg partials: no big
    # temporaries, plain VPU adds, fully hidden under the HBM DMA.
    def body(i, carry):
        d, xx = carry
        xv = x_ref[i].astype(jnp.float32)   # (sub, 128)
        cv = c_ref[i].astype(jnp.float32)   # (sub, 128)
        return d + xv * cv, xx + xv * xv

    zeros = jnp.zeros((sub, 128), jnp.float32)
    d, xx = jax.lax.fori_loop(0, gpb, body, (zeros, zeros),
                              unroll=min(8, gpb))
    dot_acc[...] += d
    xx_acc[...] += xx

    @pl.when(k == pl.num_programs(0) - 1)
    def _():
        dot = jnp.sum(dot_acc[...])
        nx = jnp.sqrt(jnp.sum(xx_acc[...]))
        nc = jnp.sqrt(cav_sq_ref[0, 0])          # precomputed ||cav||^2 (SMEM)
        # torch.nn.CosineSimilarity eps semantics: clamp each norm separately.
        cos = dot / (jnp.maximum(nx, EPS) * jnp.maximum(nc, EPS))
        p = (cos + 1.0) * 0.5                    # .add(1).divide(2)
        lane = jax.lax.broadcasted_iota(jnp.int32, (1, 2), 1)
        out_ref[...] = jnp.where(lane == 0, 1.0 - p, p)   # [1 - p, p]


class CosineClassifier:
    """One-time cav preparation (init) + Pallas forward (call)."""

    def __init__(self, cav, dtype=jnp.float32,
                 max_groups_per_block=_MAX_GROUPS_PER_BLOCK):
        cav_flat = jnp.asarray(cav, jnp.float32).reshape(-1)
        self.n = cav_flat.size
        self.dtype = jnp.dtype(dtype)

        # Full vreg packing: 8 sublanes for 32-bit, 16 for 16-bit dtypes.
        self.sub = 8 * (4 // self.dtype.itemsize)
        group = self.sub * 128

        g = pl.cdiv(self.n, group)
        self.gpb = min(g, max_groups_per_block)
        g_pad = pl.cdiv(g, self.gpb) * self.gpb
        self.n_pad = g_pad * group
        self.num_steps = g_pad // self.gpb

        if self.n_pad != self.n:
            # Zero padding is exact for dot/norm; done ONCE here for cav.
            cav_flat = jnp.pad(cav_flat, (0, self.n_pad - self.n))

        cav_stored = cav_flat.astype(self.dtype)
        self.c3 = cav_stored.reshape(g_pad, self.sub, 128)

        # ||cav||^2 from the stored (possibly bf16-rounded) values, in f32.
        cav_back = cav_stored.astype(jnp.float32)
        self.cav_sq = jnp.sum(cav_back * cav_back).reshape(1, 1)

    def __call__(self, x):
        assert x.size == self.n, "x must have the same number of elements as cav"
        x_flat = x.reshape(-1).astype(self.dtype)
        if self.n_pad != self.n:
            # Only hit when N is not a multiple of the vreg group size
            # (never for the module's N = 393216). Zero pad is exact.
            x_flat = jnp.pad(x_flat, (0, self.n_pad - self.n))
        x3 = x_flat.reshape(self.c3.shape)

        gpb, sub = self.gpb, self.sub
        return pl.pallas_call(
            _cosine_kernel,
            out_shape=jax.ShapeDtypeStruct((1, 2), jnp.float32),
            grid=(self.num_steps,),
            in_specs=[
                pl.BlockSpec(memory_space=pltpu.MemorySpace.SMEM),    # ||cav||^2
                pl.BlockSpec((gpb, sub, 128), lambda k: (k, 0, 0)),   # x tile
                pl.BlockSpec((gpb, sub, 128), lambda k: (k, 0, 0)),   # cav tile
            ],
            out_specs=pl.BlockSpec((1, 2), lambda k: (0, 0)),
            scratch_shapes=[
                pltpu.VMEM((sub, 128), jnp.float32),   # dot partial
                pltpu.VMEM((sub, 128), jnp.float32),   # ||x||^2 partial
            ],
            compiler_params=pltpu.CompilerParams(
                dimension_semantics=("arbitrary",),    # feature axis = reduction
                vmem_limit_bytes=32 * 1024 * 1024,
            ),
        )(self.cav_sq, x3, self.c3)


if __name__ == "__main__":
    # Small shapes consistent with the module: original uses seq*hidden =
    # 393216 (512 * 768); here we use seq=8, hidden=512 -> N = 4096.
    seq, hidden = 8, 512
    n = seq * hidden

    key = jax.random.PRNGKey(0)
    kx, kcav = jax.random.split(key, 2)

    x = jax.random.normal(kx, (1, seq, hidden), dtype=jnp.float32)
    cav = jax.random.normal(kcav, (1, n), dtype=jnp.float32)

    # Pure-JAX reference (PyTorch eps semantics).
    xf = x.reshape(1, n)
    cos_ref = jnp.sum(xf * cav) / (
        jnp.maximum(jnp.linalg.norm(xf), EPS)
        * jnp.maximum(jnp.linalg.norm(cav), EPS))
    p_ref = (cos_ref + 1.0) / 2.0
    ref = jnp.stack([1.0 - p_ref, p_ref]).reshape(1, 2)

    # f32 classifier (exactly matches the PyTorch FloatTensor semantics).
    clf_f32 = CosineClassifier(cav, dtype=jnp.float32)
    out_f32 = jax.block_until_ready(clf_f32(x))
    assert out_f32.shape == (1, 2)
    assert jnp.allclose(out_f32, ref, atol=1e-5, rtol=1e-5), (out_f32, ref)

    # bf16-stored classifier: halves HBM bytes for this HBM-bound kernel.
    clf_bf16 = CosineClassifier(cav, dtype=jnp.bfloat16)
    out_bf16 = jax.block_until_ready(clf_bf16(x))
    assert out_bf16.shape == (1, 2)
    assert jnp.allclose(out_bf16, ref, atol=5e-3), (out_bf16, ref)

    print("KERNEL_OK")
</pallas_src>

<mosaic_0001>
module attributes {stable_mosaic.version = 11 : i64} {
  func.func @_cosine_kernel(%arg0: i32, %arg1: memref<1x1xf32, #tpu.memory_space<smem>>, %arg2: memref<4x8x128xf32, #tpu.memory_space<vmem>>, %arg3: memref<4x8x128xf32, #tpu.memory_space<vmem>>, %arg4: memref<1x2xf32, #tpu.memory_space<vmem>>, %arg5: memref<8x128xf32, #tpu.memory_space<vmem>>, %arg6: memref<8x128xf32, #tpu.memory_space<vmem>>) attributes {dimension_semantics = [#tpu.dimension_semantics<arbitrary>], iteration_bounds = array<i64: 1>, scalar_prefetch = 0 : i64, scratch_operands = 2 : i64, tpu.core_type = #tpu.core_type<tc>, window_params = [{transform_indices = @transform_0, window_bounds = array<i64: 1, 1>}, {transform_indices = @transform_1, window_bounds = array<i64: 4, 8, 128>}, {transform_indices = @transform_2, window_bounds = array<i64: 4, 8, 128>}, {pipeline_mode = #tpu.pipeline_mode<synchronous>, transform_indices = @transform_3, window_bounds = array<i64: 1, 2>}]} {
    %c0_i32 = arith.constant 0 : i32
    %0 = arith.cmpi eq, %arg0, %c0_i32 : i32
    %1 = arith.extui %0 : i1 to i32
    %c0_i32_0 = arith.constant 0 : i32
    %2 = arith.cmpi ne, %1, %c0_i32_0 : i32
    scf.if %2 {
      %cst_27 = arith.constant 0.000000e+00 : f32
      %53 = vector.broadcast %cst_27 : f32 to vector<8x128xf32>
      %c0_28 = arith.constant 0 : index
      %c0_29 = arith.constant 0 : index
      %54 = vector.load %arg5[%c0_28, %c0_29] : memref<8x128xf32, #tpu.memory_space<vmem>>, vector<8x128xf32>
      tpu.vector_store %arg5[%c0_28, %c0_29], %53 {strides = array<i32>} : memref<8x128xf32, #tpu.memory_space<vmem>>, vector<8x128xf32>,
      %cst_30 = arith.constant 0.000000e+00 : f32
      %55 = vector.broadcast %cst_30 : f32 to vector<8x128xf32>
      %c0_31 = arith.constant 0 : index
      %c0_32 = arith.constant 0 : index
      %56 = vector.load %arg6[%c0_31, %c0_32] : memref<8x128xf32, #tpu.memory_space<vmem>>, vector<8x128xf32>
      tpu.vector_store %arg6[%c0_31, %c0_32], %55 {strides = array<i32>} : memref<8x128xf32, #tpu.memory_space<vmem>>, vector<8x128xf32>,
    } else {
    }
    %cst = arith.constant 0.000000e+00 : f32
    %3 = vector.broadcast %cst : f32 to vector<8x128xf32>
    %c0_i32_1 = arith.constant 0 : i32
    %4 = arith.index_cast %c0_i32_1 : i32 to index
    %c0 = arith.constant 0 : index
    %c0_2 = arith.constant 0 : index
    %5 = vector.load %arg2[%4, %c0, %c0_2] : memref<4x8x128xf32, #tpu.memory_space<vmem>>, vector<1x8x128xf32>
    %6 = vector.shape_cast %5 : vector<1x8x128xf32> to vector<8x128xf32>
    %7 = arith.index_cast %c0_i32_1 : i32 to index
    %c0_3 = arith.constant 0 : index
    %c0_4 = arith.constant 0 : index
    %8 = vector.load %arg3[%7, %c0_3, %c0_4] : memref<4x8x128xf32, #tpu.memory_space<vmem>>, vector<1x8x128xf32>
    %9 = vector.shape_cast %8 : vector<1x8x128xf32> to vector<8x128xf32>
    %10 = arith.mulf %6, %9 : vector<8x128xf32>
    %11 = arith.addf %3, %10 : vector<8x128xf32>
    %12 = arith.mulf %6, %6 : vector<8x128xf32>
    %13 = arith.addf %3, %12 : vector<8x128xf32>
    %c1_i32 = arith.constant 1 : i32
    %14 = arith.index_cast %c1_i32 : i32 to index
    %c0_5 = arith.constant 0 : index
    %c0_6 = arith.constant 0 : index
    %15 = vector.load %arg2[%14, %c0_5, %c0_6] : memref<4x8x128xf32, #tpu.memory_space<vmem>>, vector<1x8x128xf32>
    %16 = vector.shape_cast %15 : vector<1x8x128xf32> to vector<8x128xf32>
    %17 = arith.index_cast %c1_i32 : i32 to index
    %c0_7 = arith.constant 0 : index
    %c0_8 = arith.constant 0 : index
    %18 = vector.load %arg3[%17, %c0_7, %c0_8] : memref<4x8x128xf32, #tpu.memory_space<vmem>>, vector<1x8x128xf32>
    %19 = vector.shape_cast %18 : vector<1x8x128xf32> to vector<8x128xf32>
    %20 = arith.mulf %16, %19 : vector<8x128xf32>
    %21 = arith.addf %11, %20 : vector<8x128xf32>
    %22 = arith.mulf %16, %16 : vector<8x128xf32>
    %23 = arith.addf %13, %22 : vector<8x128xf32>
    %c2_i32 = arith.constant 2 : i32
    %24 = arith.index_cast %c2_i32 : i32 to index
    %c0_9 = arith.constant 0 : index
    %c0_10 = arith.constant 0 : index
    %25 = vector.load %arg2[%24, %c0_9, %c0_10] : memref<4x8x128xf32, #tpu.memory_space<vmem>>, vector<1x8x128xf32>
    %26 = vector.shape_cast %25 : vector<1x8x128xf32> to vector<8x128xf32>
    %27 = arith.index_cast %c2_i32 : i32 to index
    %c0_11 = arith.constant 0 : index
    %c0_12 = arith.constant 0 : index
    %28 = vector.load %arg3[%27, %c0_11, %c0_12] : memref<4x8x128xf32, #tpu.memory_space<vmem>>, vector<1x8x128xf32>
    %29 = vector.shape_cast %28 : vector<1x8x128xf32> to vector<8x128xf32>
    %30 = arith.mulf %26, %29 : vector<8x128xf32>
    %31 = arith.addf %21, %30 : vector<8x128xf32>
    %32 = arith.mulf %26, %26 : vector<8x128xf32>
    %33 = arith.addf %23, %32 : vector<8x128xf32>
    %c3_i32 = arith.constant 3 : i32
    %34 = arith.index_cast %c3_i32 : i32 to index
    %c0_13 = arith.constant 0 : index
    %c0_14 = arith.constant 0 : index
    %35 = vector.load %arg2[%34, %c0_13, %c0_14] : memref<4x8x128xf32, #tpu.memory_space<vmem>>, vector<1x8x128xf32>
    %36 = vector.shape_cast %35 : vector<1x8x128xf32> to vector<8x128xf32>
    %37 = arith.index_cast %c3_i32 : i32 to index
    %c0_15 = arith.constant 0 : index
    %c0_16 = arith.constant 0 : index
    %38 = vector.load %arg3[%37, %c0_15, %c0_16] : memref<4x8x128xf32, #tpu.memory_space<vmem>>, vector<1x8x128xf32>
    %39 = vector.shape_cast %38 : vector<1x8x128xf32> to vector<8x128xf32>
    %40 = arith.mulf %36, %39 : vector<8x128xf32>
    %41 = arith.addf %31, %40 : vector<8x128xf32>
    %42 = arith.mulf %36, %36 : vector<8x128xf32>
    %43 = arith.addf %33, %42 : vector<8x128xf32>
    %c4_i32 = arith.constant 4 : i32
    %c0_17 = arith.constant 0 : index
    %c0_18 = arith.constant 0 : index
    %44 = vector.load %arg5[%c0_17, %c0_18] : memref<8x128xf32, #tpu.memory_space<vmem>>, vector<8x128xf32>
    %45 = arith.addf %44, %41 : vector<8x128xf32>
    %c0_19 = arith.constant 0 : index
    %c0_20 = arith.constant 0 : index
    %46 = vector.load %arg5[%c0_19, %c0_20] : memref<8x128xf32, #tpu.memory_space<vmem>>, vector<8x128xf32>
    tpu.vector_store %arg5[%c0_19, %c0_20], %45 {strides = array<i32>} : memref<8x128xf32, #tpu.memory_space<vmem>>, vector<8x128xf32>,
    %c0_21 = arith.constant 0 : index
    %c0_22 = arith.constant 0 : index
    %47 = vector.load %arg6[%c0_21, %c0_22] : memref<8x128xf32, #tpu.memory_space<vmem>>, vector<8x128xf32>
    %48 = arith.addf %47, %43 : vector<8x128xf32>
    %c0_23 = arith.constant 0 : index
    %c0_24 = arith.constant 0 : index
    %49 = vector.load %arg6[%c0_23, %c0_24] : memref<8x128xf32, #tpu.memory_space<vmem>>, vector<8x128xf32>
    tpu.vector_store %arg6[%c0_23, %c0_24], %48 {strides = array<i32>} : memref<8x128xf32, #tpu.memory_space<vmem>>, vector<8x128xf32>,
    %c0_i32_25 = arith.constant 0 : i32
    %50 = arith.cmpi eq, %arg0, %c0_i32_25 : i32
    %51 = arith.extui %50 : i1 to i32
    %c0_i32_26 = arith.constant 0 : i32
    %52 = arith.cmpi ne, %51, %c0_i32_26 : i32
    scf.if %52 {
      %c0_27 = arith.constant 0 : index
      %c0_28 = arith.constant 0 : index
      %53 = vector.load %arg5[%c0_27, %c0_28] : memref<8x128xf32, #tpu.memory_space<vmem>>, vector<8x128xf32>
      %54 = vector.shape_cast %53 : vector<8x128xf32> to vector<1x8x128xf32>
      %cst_29 = arith.constant dense<0.000000e+00> : vector<1xf32>
      %55 = vector.multi_reduction <add>, %54, %cst_29 [1, 2] : vector<1x8x128xf32> to vector<1xf32>
      %56 = vector.shape_cast %55 : vector<1xf32> to vector<1x1x1xf32>
      %57 = vector.extract %56[0, 0, 0] : f32 from vector<1x1x1xf32>
      %c0_30 = arith.constant 0 : index
      %c0_31 = arith.constant 0 : index
      %58 = vector.load %arg6[%c0_30, %c0_31] : memref<8x128xf32, #tpu.memory_space<vmem>>, vector<8x128xf32>
      %59 = vector.shape_cast %58 : vector<8x128xf32> to vector<1x8x128xf32>
      %cst_32 = arith.constant dense<0.000000e+00> : vector<1xf32>
      %60 = vector.multi_reduction <add>, %59, %cst_32 [1, 2] : vector<1x8x128xf32> to vector<1xf32>
      %61 = vector.shape_cast %60 : vector<1xf32> to vector<1x1x1xf32>
      %62 = vector.extract %61[0, 0, 0] : f32 from vector<1x1x1xf32>
      %63 = math.sqrt %62 : f32
      %c0_33 = arith.constant 0 : index
      %c0_34 = arith.constant 0 : index
      %64 = memref.load %arg1[%c0_33, %c0_34] : memref<1x1xf32, #tpu.memory_space<smem>>
      %65 = math.sqrt %64 : f32
      %cst_35 = arith.constant 9.99999993E-9 : f32
      %66 = arith.maximumf %63, %cst_35 : f32
      %cst_36 = arith.constant 9.99999993E-9 : f32
      %67 = arith.maximumf %65, %cst_36 : f32
      %68 = arith.mulf %66, %67 : f32
      %69 = arith.divf %57, %68 : f32
      %cst_37 = arith.constant 1.000000e+00 : f32
      %70 = arith.addf %69, %cst_37 : f32
      %cst_38 = arith.constant 5.000000e-01 : f32
      %71 = arith.mulf %70, %cst_38 : f32
      %72 = tpu.iota {dimensions = array<i32: 1>} : vector<1x2xi32>
      %c0_i32_39 = arith.constant 0 : i32
      %73 = vector.broadcast %c0_i32_39 : i32 to vector<1x2xi32>
      %74 = arith.cmpi eq, %72, %73 : vector<1x2xi32>
      %cst_40 = arith.constant 1.000000e+00 : f32
      %75 = arith.subf %cst_40, %71 : f32
      %76 = vector.broadcast %75 : f32 to vector<1x2xf32>
      %77 = vector.broadcast %71 : f32 to vector<1x2xf32>
      %78 = arith.select %74, %76, %77 : vector<1x2xi1>, vector<1x2xf32>
      %c0_41 = arith.constant 0 : index
      %c0_42 = arith.constant 0 : index
      %79 = vector.load %arg4[%c0_41, %c0_42] : memref<1x2xf32, #tpu.memory_space<vmem>>, vector<1x2xf32>
      tpu.vector_store %arg4[%c0_41, %c0_42], %78 {strides = array<i32>} : memref<1x2xf32, #tpu.memory_space<vmem>>, vector<1x2xf32>,
    } else {
    }
    return
  }
  func.func @transform_0(%arg0: i32) -> (i32, i32) {
    %c0_i32 = arith.constant 0 : i32
    %c0_i32_0 = arith.constant 0 : i32
    %c0_i32_1 = arith.constant 0 : i32
    return %c0_i32, %c0_i32_0 : i32, i32
  }
  func.func @transform_1(%arg0: i32) -> (i32, i32, i32) {
    %c0_i32 = arith.constant 0 : i32
    %c0_i32_0 = arith.constant 0 : i32
    %c0_i32_1 = arith.constant 0 : i32
    return %arg0, %c0_i32, %c0_i32_0 : i32, i32, i32
  }
  func.func @transform_2(%arg0: i32) -> (i32, i32, i32) {
    %c0_i32 = arith.constant 0 : i32
    %c0_i32_0 = arith.constant 0 : i32
    %c0_i32_1 = arith.constant 0 : i32
    return %arg0, %c0_i32, %c0_i32_0 : i32, i32, i32
  }
  func.func @transform_3(%arg0: i32) -> (i32, i32) {
    %c0_i32 = arith.constant 0 : i32
    %c0_i32_0 = arith.constant 0 : i32
    %c0_i32_1 = arith.constant 0 : i32
    return %c0_i32, %c0_i32_0 : i32, i32
  }
}

</mosaic_0001>

<llo_original>
// kernel: tpu_custom_call.1
$region0: #{tpu_custom_call.1}
  #allocation0 [shape = 'u32[]', space=smem, size = 0x4, offset = 0x4, fixed_abs, tag = 'smem constant byte address 0x4 - core index']
  #allocation1 [shape = 'u32[144,128]{1,0:T(1,128)}', space=vmem, size = 0x12000, scoped, tag = 'internal scratch']
  #allocation2 [shape = 'f32[8,128]{1,0:T(8,128)}', space=vmem, size = 0x1000, scoped, tag = 'scratch operand']
  #allocation3 [shape = 'f32[8,128]{1,0:T(8,128)}', space=vmem, size = 0x1000, scoped, tag = 'scratch operand']
  #allocation4 [shape = 'f32[1,1]{1,0:T(1,128)S(6)}', space=smem, size = 0x200, scoped, tag = 'scoped memory for tpu_custom_call.1']
  %s0 = inlined_call_operand.<no memory space> [shape: f32[1,1], index: 0, kind: input, shape index: {}]
  %s1 = inlined_call_operand.hbm [shape: f32[4,8,128], index: 1, kind: input, shape index: {}]
  %s2 = inlined_call_operand.hbm [shape: f32[4,8,128], index: 2, kind: input, shape index: {}]
  %s3 = inlined_call_operand.hbm [shape: f32[1,2], index: 3, kind: output, shape index: {}]
  %s4 = sld [smem:[#allocation0]]
  $region38: #{tpu_custom_call.1} parent=0
    _
  %s6 = ssub.s32 1, %s4
  %s7 = scalar_select 0, %s6, %s4
  %8 = sst [smem:[#allocation4]] %s0
  $region1: #{tpu_custom_call.1} parent=0
    #allocation5 [shape = 'u8[16384]{0}', space=vmem, size = 0x4000, scoped, tag = 'input window, operand 1, single buffered']
    #allocation6 [shape = 's32[1]{0}', space=sflag, size = 0x4, scoped, tag = 'scoped memory for tpu_custom_call.1']
    #allocation7 [shape = 's32[1]{0}', space=sflag, size = 0x4, scoped, tag = 'scoped memory for tpu_custom_call.1']
    #allocation8 [shape = 'u8[16384]{0}', space=vmem, size = 0x4000, scoped, tag = 'input window, operand 2, single buffered']
    #allocation9 [shape = 's32[1]{0}', space=sflag, size = 0x4, scoped, tag = 'scoped memory for tpu_custom_call.1']
    #allocation10 [shape = 'u8[512]{0}', space=vmem, size = 0x400, scoped, tag = 'output window, operand 0, single buffered']
    %9 = vsyncpa [#allocation6], 0
    %10 = vsyncpa [#allocation9], 0
    %11 = vsyncpa [#allocation7], 0
    // Predicated region
    $region2: #{tpu_custom_call.1} parent=1 // pred_check
      _
    $region3: #{tpu_custom_call.1} parent=1 // pred_check_branch
      %13 = sbr.rel (0) target = $region5
    $region4: #{tpu_custom_call.1} parent=1 // pred_region
      _
    $region5: #{tpu_custom_call.1} parent=1 // pred_fallthru
      _
    // Predicated region
    $region6: #{tpu_custom_call.1} parent=1 // pred_check
      _
    $region7: #{tpu_custom_call.1} parent=1 // pred_check_branch
      %15 = sbr.rel (0) target = $region9
    $region8: #{tpu_custom_call.1} parent=1 // pred_region
      %s17 = ssub.s32 512, 512
      %18 = vsyncadd [#allocation6], %s17
      %s19 = sshll.u32 [#allocation5], 4
      %s20 = int_to_ptr.vmem [resolvable:$true] %s19
      %25 = dma.hbm_to_vmem [thread:$0]  %s1, 512, %s20, [#allocation6], 128, 128, 8
    $region9: #{tpu_custom_call.1} parent=1 // pred_fallthru
      _
    // Predicated region
    $region10: #{tpu_custom_call.1} parent=1 // pred_check
      _
    $region11: #{tpu_custom_call.1} parent=1 // pred_check_branch
      %27 = sbr.rel (0) target = $region13
    $region12: #{tpu_custom_call.1} parent=1 // pred_region
      %s29 = ssub.s32 512, 512
      %30 = vsyncadd [#allocation9], %s29
      %s31 = sshll.u32 [#allocation8], 4
      %s32 = int_to_ptr.vmem [resolvable:$true] %s31
      %37 = dma.hbm_to_vmem [thread:$0]  %s2, 512, %s32, [#allocation9], 128, 128, 8
    $region13: #{tpu_custom_call.1} parent=1 // pred_fallthru
      _
    // Predicated region
    $region14: #{tpu_custom_call.1} parent=1 // pred_check
      _
    $region15: #{tpu_custom_call.1} parent=1 // pred_check_branch
      %39 = sbr.rel (0) target = $region17
    $region16: #{tpu_custom_call.1} parent=1 // pred_region
      %40 = dma.done [#allocation6], 512
    $region17: #{tpu_custom_call.1} parent=1 // pred_fallthru
      _
    // Predicated region
    $region18: #{tpu_custom_call.1} parent=1 // pred_check
      _
    $region19: #{tpu_custom_call.1} parent=1 // pred_check_branch
      %42 = sbr.rel (0) target = $region21
    $region20: #{tpu_custom_call.1} parent=1 // pred_region
      %43 = dma.done [#allocation9], 512
    $region21: #{tpu_custom_call.1} parent=1 // pred_fallthru
      _
    %p44 = scmp.eq.s32.totalorder 0, 0
    // Predicated region
    $region22: #{tpu_custom_call.1} parent=1 // pred_check
      %p45 = pneg %p44
    $region23: #{tpu_custom_call.1} parent=1 // pred_check_branch
      %47 = sbr.rel (%p45) target = $region25
    $region24: #{tpu_custom_call.1} parent=1 // pred_region
      %48 = vst [vmem:[#allocation2] sm:$0xff] 0.0
      %49 = vst [vmem:[#allocation3] sm:$0xff] 0.0
    $region25: #{tpu_custom_call.1} parent=1 // pred_fallthru
      _
    %v50 = vld [vmem:[#allocation5] sm:$0xff]
    %v51 = vld [vmem:[#allocation8] sm:$0xff]
    %v52 = vmul.f32 %v50, %v51
    %v53 = vadd.f32 %v52, 0.0
    %v54 = vmul.f32 %v50, %v50
    %v55 = vadd.f32 %v54, 0.0
    %s56 = scalar_lea.vmem [#allocation5], 8
    %v57 = vld [vmem:[%s56] sm:$0xff]
    %s58 = scalar_lea.vmem [#allocation8], 8
    %v59 = vld [vmem:[%s58] sm:$0xff]
    %v60 = vmul.f32 %v57, %v59
    %v61 = vadd.f32 %v53, %v60
    %v62 = vmul.f32 %v57, %v57
    %v63 = vadd.f32 %v55, %v62
    %s64 = scalar_lea.vmem [#allocation5], 16
    %v65 = vld [vmem:[%s64] sm:$0xff]
    %s66 = scalar_lea.vmem [#allocation8], 16
    %v67 = vld [vmem:[%s66] sm:$0xff]
    %v68 = vmul.f32 %v65, %v67
    %v69 = vadd.f32 %v61, %v68
    %v70 = vmul.f32 %v65, %v65
    %v71 = vadd.f32 %v63, %v70
    %s72 = scalar_lea.vmem [#allocation5], 24
    %v73 = vld [vmem:[%s72] sm:$0xff]
    %s74 = scalar_lea.vmem [#allocation8], 24
    %v75 = vld [vmem:[%s74] sm:$0xff]
    %v76 = vmul.f32 %v73, %v75
    %v77 = vadd.f32 %v69, %v76
    %v78 = vmul.f32 %v73, %v73
    %v79 = vadd.f32 %v71, %v78
    %v80 = vld [vmem:[#allocation2] sm:$0xff]
    %v81 = vadd.f32 %v80, %v77
    %82 = vst [vmem:[#allocation2] sm:$0xff] %v81
    %v83 = vld [vmem:[#allocation3] sm:$0xff]
    %v84 = vadd.f32 %v83, %v79
    %85 = vst [vmem:[#allocation3] sm:$0xff] %v84
    // Predicated region
    $region26: #{tpu_custom_call.1} parent=1 // pred_check
      %p86 = pneg %p44
    $region27: #{tpu_custom_call.1} parent=1 // pred_check_branch
      %88 = sbr.rel (%p86) target = $region29
    $region28: #{tpu_custom_call.1} parent=1 // pred_region
      %v89 = vld [vmem:[#allocation2] sm:$0xff]
      %90 = vadd.xlane.f32.xlu0 %v89
      %v91 = vpop.xlane.xlu0 %90
      %v92 = vrot.slane %v91, 4
      %v93 = vadd.f32 %v91, %v92
      %v94 = vrot.slane %v93, 2
      %v95 = vadd.f32 %v93, %v94
      %v96 = vrot.slane %v95, 1
      %v97 = vadd.f32 %v95, %v96
      %s98 = vtos %v97
      %v99 = vld [vmem:[#allocation3] sm:$0xff]
      %100 = vadd.xlane.f32.xlu0 %v99
      %v101 = vpop.xlane.xlu0 %100
      %v102 = vrot.slane %v101, 4
      %v103 = vadd.f32 %v101, %v102
      %v104 = vrot.slane %v103, 2
      %v105 = vadd.f32 %v103, %v104
      %v106 = vrot.slane %v105, 1
      %v107 = vadd.f32 %v105, %v106
      %s108 = vtos %v107
      %v109 = vstv %s108
      %v110 = vrsqrt.pop %v109
      %v111 = vmul.f32 %v109, %v110
      %vm112 = vcmp.eq.f32.partialorder %v109, inf
      %v113 = vsel %vm112, %v109, %v111
      %vm114 = vcmp.eq.f32.partialorder %v109, 0.0
      %v115 = vand.u32 %v109, 2147483648
      %v116 = vsel %vm114, %v115, %v113
      %s117 = vtos %v116
      %s118 = sld [smem:[#allocation4]]
      %v119 = vstv %s118
      %v120 = vrsqrt.pop %v119
      %v121 = vmul.f32 %v119, %v120
      %vm122 = vcmp.eq.f32.partialorder %v119, inf
      %v123 = vsel %vm122, %v119, %v121
      %vm124 = vcmp.eq.f32.partialorder %v119, 0.0
      %v125 = vand.u32 %v119, 2147483648
      %v126 = vsel %vm124, %v125, %v123
      %s127 = vtos %v126
      %s128 = smax.f32 %s117, 1e-08
      %s129 = smax.f32 %s127, 1e-08
      %s130 = smul.f32 %s128, %s129
      %v131 = vstv %s130
      %v132 = vrcp.pop %v131
      %s133 = vtos %v132
      %s134 = smul.f32 %s98, %s133
      %s135 = sadd.f32 %s134, 1.0
      %s136 = smul.f32 %s135, 0.5
      %v137 = vlaneseq
      %v138 = vand.u32 %v137, 127
      %vm139 = vcmp.eq.s32.totalorder %v138, 0
      %s140 = ssub.f32 1.0, %s136
      %v141 = vstv %s140
      %v142 = vstv %s136
      %v143 = vsel %vm139, %v141, %v142
      %vm144 = vcmask 8192
      %145 = vst.msk [vmem:[#allocation10] sm:$0x1] %vm144, %v143
    $region29: #{tpu_custom_call.1} parent=1 // pred_fallthru
      _
    // Predicated region
    $region30: #{tpu_custom_call.1} parent=1 // pred_check
      _
    $region31: #{tpu_custom_call.1} parent=1 // pred_check_branch
      %147 = sbr.rel (0) target = $region33
    $region32: #{tpu_custom_call.1} parent=1 // pred_region
      %s149 = ssub.s32 16, 16
      %150 = vsyncadd [#allocation7], %s149
      %s152 = sshll.u32 [#allocation10], 4
      %s153 = int_to_ptr.vmem [resolvable:$true] %s152
      %155 = dma.vmem_to_hbm [thread:$0]  %s153, 16, %s3, [#allocation7]
    $region33: #{tpu_custom_call.1} parent=1 // pred_fallthru
      _
    // Predicated region
    $region34: #{tpu_custom_call.1} parent=1 // pred_check
      _
    $region35: #{tpu_custom_call.1} parent=1 // pred_check_branch
      %157 = sbr.rel (0) target = $region37
    $region36: #{tpu_custom_call.1} parent=1 // pred_region
      %158 = dma.done [#allocation7], 16
    $region37: #{tpu_custom_call.1} parent=1 // pred_fallthru
      _
    %159 = vsyncpa [#allocation6], 1
    %160 = vsyncpa [#allocation9], 1
    %161 = vsyncpa [#allocation7], 1

</llo_original>
